<compile_context>
chip_gen: v7x
topology: tpu7x:2x2x1
jax: 0.10.0
libtpu: 0.0.40
codegen_flags: <defaults>
</compile_context>

<pallas_src>
import functools

import jax
import jax.numpy as jnp
import numpy as np
from jax.experimental import pallas as pl
from jax.experimental.pallas import tpu as pltpu


def _aggr_kernel(a_ref, h_ref, c5_ref, *, l, lanes):
    # a_ref : (N, N)  bf16 VMEM   (normalized adjacency D^-1/2 A D^-1/2)
    # h_ref : (N, 1)  f32  VMEM   (single feature column, no host-side padding)
    # c5_ref: (l,)    f32  SMEM   (sum(h**2) after every layer)
    n = h_ref.shape[0]
    a = a_ref[...]                                            # bf16 (N, N)

    # Replicate the single feature column across all MXU lanes.  Every column
    # then carries identical data through the whole layer chain, so the matmuls
    # are lane-dense and the squared-sum over the block is exactly lanes * true.
    h = jnp.broadcast_to(h_ref[...], (n, lanes))              # f32 (N, 128)
    inv_lanes = 1.0 / lanes                                   # exact power of two

    for i in range(l):                                        # l small & static
        # bf16 x bf16 MXU matmul with f32 accumulation.
        h = jnp.dot(a, h.astype(jnp.bfloat16),
                    preferred_element_type=jnp.float32)       # f32 (N, 128)
        c5_ref[i] = jnp.sum(h * h) * inv_lanes                # scalar per layer


def aggr_forward(a_hat, h0, l, *, lanes=128):
    """Run l symmetric-normalized graph-conv steps, return (l,) sums of squares."""
    n = a_hat.shape[0]
    a_bf16 = a_hat.astype(jnp.bfloat16)      # halve A's HBM->VMEM traffic
    kernel = functools.partial(_aggr_kernel, l=l, lanes=lanes)

    cost = pl.CostEstimate(
        flops=2 * l * n * n * lanes,
        transcendentals=0,
        bytes_accessed=(a_bf16.size * a_bf16.dtype.itemsize
                        + h0.size * h0.dtype.itemsize
                        + l * 4),
    )

    return pl.pallas_call(
        kernel,
        out_shape=jax.ShapeDtypeStruct((l,), jnp.float32),
        in_specs=[
            pl.BlockSpec(memory_space=pltpu.MemorySpace.VMEM),  # A_hat (N, N) bf16
            pl.BlockSpec(memory_space=pltpu.MemorySpace.VMEM),  # h0    (N, 1) f32
        ],
        out_specs=pl.BlockSpec(memory_space=pltpu.MemorySpace.SMEM),
        compiler_params=pltpu.CompilerParams(
            # Explicit budget (safe on v5e/v6e/v7x).  For N beyond ~4k (bf16 A)
            # switch to streamed row-tiles of A instead of whole-array VMEM.
            vmem_limit_bytes=32 * 1024 * 1024,
        ),
        cost_estimate=cost,
    )(a_bf16, h0)


def build_graph_and_features(n_nodes, key):
    """Deterministic random symmetric graph + node features, like dgl graph + h."""
    k_adj, k_feat = jax.random.split(key)
    probs = jax.random.uniform(k_adj, (n_nodes, n_nodes))
    adj = (probs < 0.25).astype(jnp.float32)
    adj = jnp.maximum(adj, adj.T)                                 # undirected
    adj = adj * (1.0 - jnp.eye(n_nodes, dtype=jnp.float32))       # no self loops
    # guarantee every node has degree >= 1 (ring), mirroring DGL's
    # allow_zero_in_degree=False requirement
    idx = jnp.arange(n_nodes)
    ring = jnp.zeros((n_nodes, n_nodes), jnp.float32).at[idx, (idx + 1) % n_nodes].set(1.0)
    adj = jnp.maximum(adj, jnp.maximum(ring, ring.T))

    deg = adj.sum(axis=1)
    d_inv_sqrt = 1.0 / jnp.sqrt(deg)
    a_hat = adj * d_inv_sqrt[:, None] * d_inv_sqrt[None, :]       # D^-1/2 A D^-1/2

    h0 = jax.random.normal(k_feat, (n_nodes, 1), dtype=jnp.float32)
    return a_hat, h0


if __name__ == "__main__":
    N = 32          # number of graph nodes
    L = 4           # number of Aggr layers (self.l)

    a_hat, h0 = build_graph_and_features(N, jax.random.PRNGKey(0))

    c5 = aggr_forward(a_hat, h0, L)
    c5 = jax.block_until_ready(c5)

    # pure-f32 JAX reference of the PyTorch forward
    h_ref = h0
    ref = []
    for _ in range(L):
        h_ref = a_hat @ h_ref
        ref.append(jnp.sum(h_ref * h_ref))
    ref = jnp.stack(ref)

    # Tolerance loosened vs. the pure-f32 version: A (and h at each dot) are
    # rounded to bf16, which drifts sum(h**2) by ~1% over 4 chained layers.
    np.testing.assert_allclose(np.asarray(c5), np.asarray(ref), rtol=5e-2, atol=1e-3)
    print("KERNEL_OK")
</pallas_src>

<mosaic_0001>
module attributes {stable_mosaic.version = 11 : i64} {
  func.func @_aggr_kernel(%arg0: memref<32x32xbf16, #tpu.memory_space<vmem>>, %arg1: memref<32x1xf32, #tpu.memory_space<vmem>>, %arg2: memref<4xf32, #tpu.memory_space<smem>>) attributes {dimension_semantics = [], scalar_prefetch = 0 : i64, scratch_operands = 0 : i64, tpu.core_type = #tpu.core_type<tc>} {
    %c0 = arith.constant 0 : index
    %c0_0 = arith.constant 0 : index
    %0 = vector.load %arg0[%c0, %c0_0] : memref<32x32xbf16, #tpu.memory_space<vmem>>, vector<32x32xbf16>
    %c0_1 = arith.constant 0 : index
    %c0_2 = arith.constant 0 : index
    %1 = vector.load %arg1[%c0_1, %c0_2] : memref<32x1xf32, #tpu.memory_space<vmem>>, vector<32x1xf32>
    %2 = vector.shape_cast %1 : vector<32x1xf32> to vector<32x1xf32>
    %3 = vector.broadcast %2 : vector<32x1xf32> to vector<32x128xf32>
    %4 = arith.truncf %3 : vector<32x128xf32> to vector<32x128xbf16>
    %cst = arith.constant dense<0.000000e+00> : vector<32x128xf32>
    %5 = tpu.matmul %0, %4, %cst {dimension_numbers = #tpu.dot_dimension_numbers<[1], [0], [0], [1], [0, 0, 1, 1], [], []>} : vector<32x32xbf16>, vector<32x128xbf16>, vector<32x128xf32> -> vector<32x128xf32>
    %6 = arith.mulf %5, %5 : vector<32x128xf32>
    %7 = vector.shape_cast %6 : vector<32x128xf32> to vector<1x32x128xf32>
    %cst_3 = arith.constant dense<0.000000e+00> : vector<1xf32>
    %8 = vector.multi_reduction <add>, %7, %cst_3 [1, 2] : vector<1x32x128xf32> to vector<1xf32>
    %9 = vector.shape_cast %8 : vector<1xf32> to vector<1x1x1xf32>
    %10 = vector.extract %9[0, 0, 0] : f32 from vector<1x1x1xf32>
    %cst_4 = arith.constant 7.812500e-03 : f32
    %11 = arith.mulf %10, %cst_4 : f32
    %c0_5 = arith.constant 0 : index
    %12 = memref.load %arg2[%c0_5] : memref<4xf32, #tpu.memory_space<smem>>
    memref.store %11, %arg2[%c0_5] : memref<4xf32, #tpu.memory_space<smem>>
    %13 = arith.truncf %5 : vector<32x128xf32> to vector<32x128xbf16>
    %cst_6 = arith.constant dense<0.000000e+00> : vector<32x128xf32>
    %14 = tpu.matmul %0, %13, %cst_6 {dimension_numbers = #tpu.dot_dimension_numbers<[1], [0], [0], [1], [0, 0, 1, 1], [], []>} : vector<32x32xbf16>, vector<32x128xbf16>, vector<32x128xf32> -> vector<32x128xf32>
    %15 = arith.mulf %14, %14 : vector<32x128xf32>
    %16 = vector.shape_cast %15 : vector<32x128xf32> to vector<1x32x128xf32>
    %cst_7 = arith.constant dense<0.000000e+00> : vector<1xf32>
    %17 = vector.multi_reduction <add>, %16, %cst_7 [1, 2] : vector<1x32x128xf32> to vector<1xf32>
    %18 = vector.shape_cast %17 : vector<1xf32> to vector<1x1x1xf32>
    %19 = vector.extract %18[0, 0, 0] : f32 from vector<1x1x1xf32>
    %cst_8 = arith.constant 7.812500e-03 : f32
    %20 = arith.mulf %19, %cst_8 : f32
    %c1 = arith.constant 1 : index
    %21 = memref.load %arg2[%c1] : memref<4xf32, #tpu.memory_space<smem>>
    memref.store %20, %arg2[%c1] : memref<4xf32, #tpu.memory_space<smem>>
    %22 = arith.truncf %14 : vector<32x128xf32> to vector<32x128xbf16>
    %cst_9 = arith.constant dense<0.000000e+00> : vector<32x128xf32>
    %23 = tpu.matmul %0, %22, %cst_9 {dimension_numbers = #tpu.dot_dimension_numbers<[1], [0], [0], [1], [0, 0, 1, 1], [], []>} : vector<32x32xbf16>, vector<32x128xbf16>, vector<32x128xf32> -> vector<32x128xf32>
    %24 = arith.mulf %23, %23 : vector<32x128xf32>
    %25 = vector.shape_cast %24 : vector<32x128xf32> to vector<1x32x128xf32>
    %cst_10 = arith.constant dense<0.000000e+00> : vector<1xf32>
    %26 = vector.multi_reduction <add>, %25, %cst_10 [1, 2] : vector<1x32x128xf32> to vector<1xf32>
    %27 = vector.shape_cast %26 : vector<1xf32> to vector<1x1x1xf32>
    %28 = vector.extract %27[0, 0, 0] : f32 from vector<1x1x1xf32>
    %cst_11 = arith.constant 7.812500e-03 : f32
    %29 = arith.mulf %28, %cst_11 : f32
    %c2 = arith.constant 2 : index
    %30 = memref.load %arg2[%c2] : memref<4xf32, #tpu.memory_space<smem>>
    memref.store %29, %arg2[%c2] : memref<4xf32, #tpu.memory_space<smem>>
    %31 = arith.truncf %23 : vector<32x128xf32> to vector<32x128xbf16>
    %cst_12 = arith.constant dense<0.000000e+00> : vector<32x128xf32>
    %32 = tpu.matmul %0, %31, %cst_12 {dimension_numbers = #tpu.dot_dimension_numbers<[1], [0], [0], [1], [0, 0, 1, 1], [], []>} : vector<32x32xbf16>, vector<32x128xbf16>, vector<32x128xf32> -> vector<32x128xf32>
    %33 = arith.mulf %32, %32 : vector<32x128xf32>
    %34 = vector.shape_cast %33 : vector<32x128xf32> to vector<1x32x128xf32>
    %cst_13 = arith.constant dense<0.000000e+00> : vector<1xf32>
    %35 = vector.multi_reduction <add>, %34, %cst_13 [1, 2] : vector<1x32x128xf32> to vector<1xf32>
    %36 = vector.shape_cast %35 : vector<1xf32> to vector<1x1x1xf32>
    %37 = vector.extract %36[0, 0, 0] : f32 from vector<1x1x1xf32>
    %cst_14 = arith.constant 7.812500e-03 : f32
    %38 = arith.mulf %37, %cst_14 : f32
    %c3 = arith.constant 3 : index
    %39 = memref.load %arg2[%c3] : memref<4xf32, #tpu.memory_space<smem>>
    memref.store %38, %arg2[%c3] : memref<4xf32, #tpu.memory_space<smem>>
    return
  }
}

</mosaic_0001>

<llo_original>
// kernel: tpu_custom_call.1
$region0: #{tpu_custom_call.1}
  #allocation0 [shape = 'u32[]', space=smem, size = 0x4, offset = 0x4, fixed_abs, tag = 'smem constant byte address 0x4 - core index']
  #allocation1 [shape = 'u32[144,128]{1,0:T(1,128)}', space=vmem, size = 0x12000, scoped, tag = 'internal scratch']
  %s0 = inlined_call_operand.vmem [shape: bf16[32,32], index: 0, kind: input, shape index: {}]
  %s1 = inlined_call_operand.vmem [shape: f32[32,1], index: 1, kind: input, shape index: {}]
  %s2 = inlined_call_operand.hbm [shape: f32[4], index: 2, kind: output, shape index: {}]
  %s3 = sld [smem:[#allocation0]]
  $region18: #{tpu_custom_call.1} parent=0
    _
  %s5 = ssub.s32 1, %s3
  %s6 = scalar_select 0, %s5, %s3
  $region1: #{tpu_custom_call.1} parent=0
    #allocation2 [shape = 'u8[512]{0}', space=smem, size = 0x200, scoped, tag = 'output window, operand 0, single buffered']
    #allocation3 [shape = 's32[1]{0}', space=sflag, size = 0x4, scoped, tag = 'scoped memory for tpu_custom_call.1']
    %7 = vsyncpa [#allocation3], 0
    // Predicated region
    $region2: #{tpu_custom_call.1} parent=1 // pred_check
      _
    $region3: #{tpu_custom_call.1} parent=1 // pred_check_branch
      %9 = sbr.rel (0) target = $region5
    $region4: #{tpu_custom_call.1} parent=1 // pred_region
      _
    $region5: #{tpu_custom_call.1} parent=1 // pred_fallthru
      _
    // Predicated region
    $region6: #{tpu_custom_call.1} parent=1 // pred_check
      _
    $region7: #{tpu_custom_call.1} parent=1 // pred_check_branch
      %11 = sbr.rel (0) target = $region9
    $region8: #{tpu_custom_call.1} parent=1 // pred_region
      _
    $region9: #{tpu_custom_call.1} parent=1 // pred_fallthru
      _
    %v13 = vld [vmem:[%s0] sm:$0xf]
    %v14 = vld [vmem:[%s0 + $0x4] sm:$0xf]
    %v15 = vld [vmem:[%s0 + $0x8] sm:$0xf]
    %v16 = vld [vmem:[%s0 + $0xc] sm:$0xf]
    %v17 = vld [vmem:[%s1] sm:$0xff]
    %v18 = vld [vmem:[%s1 + $0x8] sm:$0xff]
    %v19 = vld [vmem:[%s1 + $0x10] sm:$0xff]
    %v20 = vld [vmem:[%s1 + $0x18] sm:$0xff]
    %22 = vset.pattern.permute.xlu0 0
    %23 = vperm.xlu0 %22, %v17
    %v24 = vpop.permute.xlu0 %23
    %27 = vset.pattern.permute.xlu0 0
    %28 = vperm.xlu0 %27, %v18
    %v29 = vpop.permute.xlu0 %28
    %32 = vset.pattern.permute.xlu0 0
    %33 = vperm.xlu0 %32, %v19
    %v34 = vpop.permute.xlu0 %33
    %37 = vset.pattern.permute.xlu0 0
    %38 = vperm.xlu0 %37, %v20
    %v39 = vpop.permute.xlu0 %38
    %v41 = vpack.c.bf16 %v29, %v24
    %v42 = vpack.c.bf16 %v39, %v34
    %v47 = vunpack.c.l.b16 %v13
    %v48 = vunpack.c.l.b16 %v14
    %v49 = vunpack.c.l.b16 %v15
    %v50 = vunpack.c.l.b16 %v16
    %v51 = vpack.c.b16 %v48, %v47
    %v52 = vpack.c.b16 %v50, %v49
    %vm53 = vcmask 261120
    %v55 = vsel %vm53, %v51, 0
    %v58 = vsel %vm53, %v52, 0
    %60 = vmatprep.subr.bf16.mxu0 0
    %61 = vmatpush1.bf16.msra.mxu0 %v41
    %62 = vmatprep.subr.bf16.mxu0 0
    %63 = vmatpush1.bf16.msra.mxu0 %v42
    %64 = vmatprep.subr.bf16.mxu0 0
    %65 = vmatpush1.bf16.msra.mxu0 0
    %66 = vmatprep.subr.bf16.mxu0 0
    %67 = vmatpush1.bf16.msra.mxu0 0
    %68 = vmatprep.subr.bf16.mxu0 0
    %69 = vmatpush1.bf16.msra.mxu0 0
    %70 = vmatprep.subr.bf16.mxu0 0
    %71 = vmatpush1.bf16.msra.mxu0 0
    %72 = vmatprep.subr.bf16.mxu0 0
    %73 = vmatpush1.bf16.msra.mxu0 0
    %74 = vmatprep.subr.bf16.mxu0 0
    %75 = vmatpush1.bf16.msra.mxu0 0
    %76 = vmatprep.subr.bf16.mxu0 0
    %77 = vmatpush1.bf16.msra.mxu0 0
    %78 = vmatprep.subr.bf16.mxu0 0
    %79 = vmatpush1.bf16.msra.mxu0 0
    %80 = vmatprep.subr.bf16.mxu0 0
    %81 = vmatpush1.bf16.msra.mxu0 0
    %82 = vmatprep.subr.bf16.mxu0 0
    %83 = vmatpush1.bf16.msra.mxu0 0
    %84 = vmatprep.subr.bf16.mxu0 0
    %85 = vmatpush1.bf16.msra.mxu0 0
    %86 = vmatprep.subr.bf16.mxu0 0
    %87 = vmatpush1.bf16.msra.mxu0 0
    %88 = vmatprep.subr.bf16.mxu0 0
    %89 = vmatpush1.bf16.msra.mxu0 0
    %90 = vmatprep.subr.bf16.mxu0 0
    %91 = vmatpush1.bf16.msra.mxu0 0
    %92 = vmatprep.mubr.bf16.mxu0 0
    %93 = vmatmul.mubr.bf16.gmra.mrb[0].mxu0 %v55
    %v94 = vpop.f32.mrb[0].mxu0
    %v95 = vadd.f32 0.0, %v94
    %v96 = vpop.f32.mrb[0].mxu0
    %v97 = vpop.f32.mrb[0].mxu0
    %v98 = vadd.f32 0.0, %v97
    %v99 = vpop.f32.mrb[0].mxu0
    %100 = vmatprep.mubr.bf16.mxu0 0
    %101 = vmatmul.mubr.bf16.gmra.mrb[0].mxu0 %v58
    %v102 = vpop.f32.mrb[0].mxu0
    %v103 = vadd.f32 0.0, %v102
    %v104 = vpop.f32.mrb[0].mxu0
    %v105 = vpop.f32.mrb[0].mxu0
    %v106 = vadd.f32 0.0, %v105
    %v107 = vpop.f32.mrb[0].mxu0
    %108 = vdwg.mxu0
    %v109 = vmul.f32 %v95, %v95
    %v110 = vmul.f32 %v98, %v98
    %v111 = vmul.f32 %v103, %v103
    %v112 = vmul.f32 %v106, %v106
    %v113 = vadd.f32 %v109, %v110
    %v114 = vadd.f32 %v113, %v111
    %v115 = vadd.f32 %v114, %v112
    %116 = vadd.xlane.f32.xlu0 %v115
    %v117 = vpop.xlane.xlu0 %116
    %v118 = vrot.slane %v117, 4
    %v119 = vadd.f32 %v117, %v118
    %v120 = vrot.slane %v119, 2
    %v121 = vadd.f32 %v119, %v120
    %v122 = vrot.slane %v121, 1
    %v123 = vadd.f32 %v121, %v122
    %s124 = vtos %v123
    %s125 = smul.f32 %s124, 0.0078125
    %s126 = scalar_lea.smem [#allocation2], 0
    %127 = sst [smem:[%s126]] %s125
    %v128 = vpack.c.bf16 %v98, %v95
    %v129 = vpack.c.bf16 %v106, %v103
    %130 = vmatprep.subr.bf16.mxu0 0
    %131 = vmatpush1.bf16.msra.mxu0 %v128
    %132 = vmatprep.subr.bf16.mxu0 0
    %133 = vmatpush1.bf16.msra.mxu0 %v129
    %134 = vmatprep.subr.bf16.mxu0 0
    %135 = vmatpush1.bf16.msra.mxu0 0
    %136 = vmatprep.subr.bf16.mxu0 0
    %137 = vmatpush1.bf16.msra.mxu0 0
    %138 = vmatprep.subr.bf16.mxu0 0
    %139 = vmatpush1.bf16.msra.mxu0 0
    %140 = vmatprep.subr.bf16.mxu0 0
    %141 = vmatpush1.bf16.msra.mxu0 0
    %142 = vmatprep.subr.bf16.mxu0 0
    %143 = vmatpush1.bf16.msra.mxu0 0
    %144 = vmatprep.subr.bf16.mxu0 0
    %145 = vmatpush1.bf16.msra.mxu0 0
    %146 = vmatprep.subr.bf16.mxu0 0
    %147 = vmatpush1.bf16.msra.mxu0 0
    %148 = vmatprep.subr.bf16.mxu0 0
    %149 = vmatpush1.bf16.msra.mxu0 0
    %150 = vmatprep.subr.bf16.mxu0 0
    %151 = vmatpush1.bf16.msra.mxu0 0
    %152 = vmatprep.subr.bf16.mxu0 0
    %153 = vmatpush1.bf16.msra.mxu0 0
    %154 = vmatprep.subr.bf16.mxu0 0
    %155 = vmatpush1.bf16.msra.mxu0 0
    %156 = vmatprep.subr.bf16.mxu0 0
    %157 = vmatpush1.bf16.msra.mxu0 0
    %158 = vmatprep.subr.bf16.mxu0 0
    %159 = vmatpush1.bf16.msra.mxu0 0
    %160 = vmatprep.subr.bf16.mxu0 0
    %161 = vmatpush1.bf16.msra.mxu0 0
    %162 = vmatprep.mubr.bf16.mxu0 0
    %163 = vmatmul.mubr.bf16.gmra.mrb[0].mxu0 %v55
    %v164 = vpop.f32.mrb[0].mxu0
    %v165 = vadd.f32 0.0, %v164
    %v166 = vpop.f32.mrb[0].mxu0
    %v167 = vpop.f32.mrb[0].mxu0
    %v168 = vadd.f32 0.0, %v167
    %v169 = vpop.f32.mrb[0].mxu0
    %170 = vmatprep.mubr.bf16.mxu0 0
    %171 = vmatmul.mubr.bf16.gmra.mrb[0].mxu0 %v58
    %v172 = vpop.f32.mrb[0].mxu0
    %v173 = vadd.f32 0.0, %v172
    %v174 = vpop.f32.mrb[0].mxu0
    %v175 = vpop.f32.mrb[0].mxu0
    %v176 = vadd.f32 0.0, %v175
    %v177 = vpop.f32.mrb[0].mxu0
    %178 = vdwg.mxu0
    %v179 = vmul.f32 %v165, %v165
    %v180 = vmul.f32 %v168, %v168
    %v181 = vmul.f32 %v173, %v173
    %v182 = vmul.f32 %v176, %v176
    %v183 = vadd.f32 %v179, %v180
    %v184 = vadd.f32 %v183, %v181
    %v185 = vadd.f32 %v184, %v182
    %186 = vadd.xlane.f32.xlu0 %v185
    %v187 = vpop.xlane.xlu0 %186
    %v188 = vrot.slane %v187, 4
    %v189 = vadd.f32 %v187, %v188
    %v190 = vrot.slane %v189, 2
    %v191 = vadd.f32 %v189, %v190
    %v192 = vrot.slane %v191, 1
    %v193 = vadd.f32 %v191, %v192
    %s194 = vtos %v193
    %s195 = smul.f32 %s194, 0.0078125
    %s196 = scalar_lea.smem [#allocation2], 1
    %197 = sst [smem:[%s196]] %s195
    %v198 = vpack.c.bf16 %v168, %v165
    %v199 = vpack.c.bf16 %v176, %v173
    %200 = vmatprep.subr.bf16.mxu0 0
    %201 = vmatpush1.bf16.msra.mxu0 %v198
    %202 = vmatprep.subr.bf16.mxu0 0
    %203 = vmatpush1.bf16.msra.mxu0 %v199
    %204 = vmatprep.subr.bf16.mxu0 0
    %205 = vmatpush1.bf16.msra.mxu0 0
    %206 = vmatprep.subr.bf16.mxu0 0
    %207 = vmatpush1.bf16.msra.mxu0 0
    %208 = vmatprep.subr.bf16.mxu0 0
    %209 = vmatpush1.bf16.msra.mxu0 0
    %210 = vmatprep.subr.bf16.mxu0 0
    %211 = vmatpush1.bf16.msra.mxu0 0
    %212 = vmatprep.subr.bf16.mxu0 0
    %213 = vmatpush1.bf16.msra.mxu0 0
    %214 = vmatprep.subr.bf16.mxu0 0
    %215 = vmatpush1.bf16.msra.mxu0 0
    %216 = vmatprep.subr.bf16.mxu0 0
    %217 = vmatpush1.bf16.msra.mxu0 0
    %218 = vmatprep.subr.bf16.mxu0 0
    %219 = vmatpush1.bf16.msra.mxu0 0
    %220 = vmatprep.subr.bf16.mxu0 0
    %221 = vmatpush1.bf16.msra.mxu0 0
    %222 = vmatprep.subr.bf16.mxu0 0
    %223 = vmatpush1.bf16.msra.mxu0 0
    %224 = vmatprep.subr.bf16.mxu0 0
    %225 = vmatpush1.bf16.msra.mxu0 0
    %226 = vmatprep.subr.bf16.mxu0 0
    %227 = vmatpush1.bf16.msra.mxu0 0
    %228 = vmatprep.subr.bf16.mxu0 0
    %229 = vmatpush1.bf16.msra.mxu0 0
    %230 = vmatprep.subr.bf16.mxu0 0
    %231 = vmatpush1.bf16.msra.mxu0 0
    %232 = vmatprep.mubr.bf16.mxu0 0
    %233 = vmatmul.mubr.bf16.gmra.mrb[0].mxu0 %v55
    %v234 = vpop.f32.mrb[0].mxu0
    %v235 = vadd.f32 0.0, %v234
    %v236 = vpop.f32.mrb[0].mxu0
    %v237 = vpop.f32.mrb[0].mxu0
    %v238 = vadd.f32 0.0, %v237
    %v239 = vpop.f32.mrb[0].mxu0
    %240 = vmatprep.mubr.bf16.mxu0 0
    %241 = vmatmul.mubr.bf16.gmra.mrb[0].mxu0 %v58
    %v242 = vpop.f32.mrb[0].mxu0
    %v243 = vadd.f32 0.0, %v242
    %v244 = vpop.f32.mrb[0].mxu0
    %v245 = vpop.f32.mrb[0].mxu0
    %v246 = vadd.f32 0.0, %v245
    %v247 = vpop.f32.mrb[0].mxu0
    %248 = vdwg.mxu0
    %v249 = vmul.f32 %v235, %v235
    %v250 = vmul.f32 %v238, %v238
    %v251 = vmul.f32 %v243, %v243
    %v252 = vmul.f32 %v246, %v246
    %v253 = vadd.f32 %v249, %v250
    %v254 = vadd.f32 %v253, %v251
    %v255 = vadd.f32 %v254, %v252
    %256 = vadd.xlane.f32.xlu0 %v255
    %v257 = vpop.xlane.xlu0 %256
    %v258 = vrot.slane %v257, 4
    %v259 = vadd.f32 %v257, %v258
    %v260 = vrot.slane %v259, 2
    %v261 = vadd.f32 %v259, %v260
    %v262 = vrot.slane %v261, 1
    %v263 = vadd.f32 %v261, %v262
    %s264 = vtos %v263
    %s265 = smul.f32 %s264, 0.0078125
    %s266 = scalar_lea.smem [#allocation2], 2
    %267 = sst [smem:[%s266]] %s265
    %v268 = vpack.c.bf16 %v238, %v235
    %v269 = vpack.c.bf16 %v246, %v243
    %270 = vmatprep.subr.bf16.mxu0 0
    %271 = vmatpush1.bf16.msra.mxu0 %v268
    %272 = vmatprep.subr.bf16.mxu0 0
    %273 = vmatpush1.bf16.msra.mxu0 %v269
    %274 = vmatprep.subr.bf16.mxu0 0
    %275 = vmatpush1.bf16.msra.mxu0 0
    %276 = vmatprep.subr.bf16.mxu0 0
    %277 = vmatpush1.bf16.msra.mxu0 0
    %278 = vmatprep.subr.bf16.mxu0 0
    %279 = vmatpush1.bf16.msra.mxu0 0
    %280 = vmatprep.subr.bf16.mxu0 0
    %281 = vmatpush1.bf16.msra.mxu0 0
    %282 = vmatprep.subr.bf16.mxu0 0
    %283 = vmatpush1.bf16.msra.mxu0 0
    %284 = vmatprep.subr.bf16.mxu0 0
    %285 = vmatpush1.bf16.msra.mxu0 0
    %286 = vmatprep.subr.bf16.mxu0 0
    %287 = vmatpush1.bf16.msra.mxu0 0
    %288 = vmatprep.subr.bf16.mxu0 0
    %289 = vmatpush1.bf16.msra.mxu0 0
    %290 = vmatprep.subr.bf16.mxu0 0
    %291 = vmatpush1.bf16.msra.mxu0 0
    %292 = vmatprep.subr.bf16.mxu0 0
    %293 = vmatpush1.bf16.msra.mxu0 0
    %294 = vmatprep.subr.bf16.mxu0 0
    %295 = vmatpush1.bf16.msra.mxu0 0
    %296 = vmatprep.subr.bf16.mxu0 0
    %297 = vmatpush1.bf16.msra.mxu0 0
    %298 = vmatprep.subr.bf16.mxu0 0
    %299 = vmatpush1.bf16.msra.mxu0 0
    %300 = vmatprep.subr.bf16.mxu0 0
    %301 = vmatpush1.bf16.msra.mxu0 0
    %302 = vmatprep.mubr.bf16.mxu0 0
    %303 = vmatmul.mubr.bf16.gmra.mrb[0].mxu0 %v55
    %v304 = vpop.f32.mrb[0].mxu0
    %v305 = vadd.f32 0.0, %v304
    %v306 = vpop.f32.mrb[0].mxu0
    %v307 = vpop.f32.mrb[0].mxu0
    %v308 = vadd.f32 0.0, %v307
    %v309 = vpop.f32.mrb[0].mxu0
    %310 = vmatprep.mubr.bf16.mxu0 0
    %311 = vmatmul.mubr.bf16.gmra.mrb[0].mxu0 %v58
    %v312 = vpop.f32.mrb[0].mxu0
    %v313 = vadd.f32 0.0, %v312
    %v314 = vpop.f32.mrb[0].mxu0
    %v315 = vpop.f32.mrb[0].mxu0
    %v316 = vadd.f32 0.0, %v315
    %v317 = vpop.f32.mrb[0].mxu0
    %318 = vdwg.mxu0
    %v319 = vmul.f32 %v305, %v305
    %v320 = vmul.f32 %v308, %v308
    %v321 = vmul.f32 %v313, %v313
    %v322 = vmul.f32 %v316, %v316
    %v323 = vadd.f32 %v319, %v320
    %v324 = vadd.f32 %v323, %v321
    %v325 = vadd.f32 %v324, %v322
    %326 = vadd.xlane.f32.xlu0 %v325
    %v327 = vpop.xlane.xlu0 %326
    %v328 = vrot.slane %v327, 4
    %v329 = vadd.f32 %v327, %v328
    %v330 = vrot.slane %v329, 2
    %v331 = vadd.f32 %v329, %v330
    %v332 = vrot.slane %v331, 1
    %v333 = vadd.f32 %v331, %v332
    %s334 = vtos %v333
    %s335 = smul.f32 %s334, 0.0078125
    %s336 = scalar_lea.smem [#allocation2], 3
    %337 = sst [smem:[%s336]] %s335
    // Predicated region
    $region10: #{tpu_custom_call.1} parent=1 // pred_check
      _
    $region11: #{tpu_custom_call.1} parent=1 // pred_check_branch
      %339 = sbr.rel (0) target = $region13
    $region12: #{tpu_custom_call.1} parent=1 // pred_region
      %s341 = ssub.s32 16, 16
      %342 = vsyncadd [#allocation3], %s341
      %345 = dma.smem_to_hbm [#allocation2], 16, %s2, [#allocation3]
    $region13: #{tpu_custom_call.1} parent=1 // pred_fallthru
      _
    // Predicated region
    $region14: #{tpu_custom_call.1} parent=1 // pred_check
      _
    $region15: #{tpu_custom_call.1} parent=1 // pred_check_branch
      %347 = sbr.rel (0) target = $region17
    $region16: #{tpu_custom_call.1} parent=1 // pred_region
      %348 = dma.done [#allocation3], 16
    $region17: #{tpu_custom_call.1} parent=1 // pred_fallthru
      _
    %349 = sfence
    %350 = vsyncpa [#allocation3], 1

</llo_original>
